<compile_context>
chip_gen: v5e
topology: v5e:2x2
jax: 0.10.0
libtpu: 0.0.40
codegen_flags: <defaults>
</compile_context>

<pallas_src>
import math
import functools

import jax
import jax.numpy as jnp
from jax import lax
from jax.experimental import pallas as pl
from jax.experimental.pallas import tpu as pltpu


def _round_up(x, m):
    return ((x + m - 1) // m) * m


def _head_epilogue(y, inv_norm, bias_f32, n_coord, n_out, out_dtype):
    """Shared finalize: norm on coord lanes, +bias, sigmoid on sigma lanes."""
    lane = lax.broadcasted_iota(jnp.int32, y.shape, 1)
    is_coord = lane < n_coord
    is_sigma = jnp.logical_and(lane >= n_coord, lane < n_out)
    y = jnp.where(is_coord, y * inv_norm, y)
    y = y + bias_f32
    y = jnp.where(is_sigma, 1.0 / (1.0 + jnp.exp(-y)), y)   # EUP exp; padded lanes stay 0
    return y.astype(out_dtype)


def _fused_head_kernel(x_ref, w_ref, b_ref, o_ref, *, n_coord, n_out):
    """Single-K-tile fast path: the dot writes straight to the output tile."""
    x = x_ref[...]
    y = jnp.dot(x, w_ref[...], preferred_element_type=jnp.float32)
    xf = x.astype(jnp.float32)
    ss = jnp.sum(xf * xf, axis=-1, keepdims=True)            # (tm, 1) row sum-of-squares
    inv_norm = lax.rsqrt(jnp.maximum(ss, jnp.float32(1e-30)))  # guard padded rows
    o_ref[...] = _head_epilogue(y, inv_norm, b_ref[...].astype(jnp.float32),
                                n_coord, n_out, o_ref.dtype)


def _fused_head_kernel_ktiled(x_ref, w_ref, b_ref, o_ref, acc_ref, ss_ref, *,
                              n_coord, n_out):
    """Fallback for very large Cin: K grid axis with an f32 VMEM accumulator."""
    k = pl.program_id(1)

    @pl.when(k == 0)
    def _init():
        acc_ref[...] = jnp.zeros_like(acc_ref)
        ss_ref[...] = jnp.zeros_like(ss_ref)

    x = x_ref[...]
    acc_ref[...] += jnp.dot(x, w_ref[...], preferred_element_type=jnp.float32)

    # Lane-dense sum-of-squares partials: (tm, 128) vector adds per K step;
    # the cross-lane reduce happens exactly once, in the finalize.
    xsq = x.astype(jnp.float32)
    xsq = xsq * xsq
    partial = ss_ref[...]
    for g in range(xsq.shape[1] // 128):
        partial = partial + xsq[:, g * 128:(g + 1) * 128]
    ss_ref[...] = partial

    @pl.when(k == pl.num_programs(1) - 1)
    def _finalize():
        ss = jnp.sum(ss_ref[...], axis=-1, keepdims=True)
        inv_norm = lax.rsqrt(jnp.maximum(ss, jnp.float32(1e-30)))
        o_ref[...] = _head_epilogue(acc_ref[...], inv_norm,
                                    b_ref[...].astype(jnp.float32),
                                    n_coord, n_out, o_ref.dtype)


def init_head_params(key, in_channel, num_joints, dtype=jnp.bfloat16):
    """fc_coord + fc_sigma params, fused, pre-transposed and pre-padded ONCE.

    Matches the PyTorch module: xavier_uniform_(W, gain=0.01); default nn.Linear
    bias init U(-1/sqrt(fan_in), 1/sqrt(fan_in)).  Weight stored as (Kp, Np) in
    `dtype` (bf16 by default); bias stored f32 (epilogue runs in f32).
    """
    n_coord = num_joints * 2
    n_sigma = num_joints * 2
    n_out = n_coord + n_sigma
    kp = _round_up(in_channel, 128)
    np_ = _round_up(n_out, 128)

    kcw, kcb, ksw, ksb = jax.random.split(key, 4)
    bound_w = 0.01 * math.sqrt(6.0 / (in_channel + n_coord))
    wc = jax.random.uniform(kcw, (n_coord, in_channel), jnp.float32, -bound_w, bound_w)
    ws = jax.random.uniform(ksw, (n_sigma, in_channel), jnp.float32, -bound_w, bound_w)
    bound_b = 1.0 / math.sqrt(in_channel)
    bc = jax.random.uniform(kcb, (n_coord,), jnp.float32, -bound_b, bound_b)
    bs = jax.random.uniform(ksb, (n_sigma,), jnp.float32, -bound_b, bound_b)

    w_fused = jnp.concatenate([wc, ws], axis=0).T            # (Cin, 4J), pre-transposed
    b_fused = jnp.concatenate([bc, bs], axis=0)              # (4J,)

    w_pad = jnp.zeros((kp, np_), dtype).at[:in_channel, :n_out].set(
        w_fused.astype(dtype))
    b_pad = jnp.zeros((1, np_), jnp.float32).at[0, :n_out].set(b_fused)
    return {"w": w_pad, "b": b_pad, "n_coord": n_coord, "n_out": n_out,
            "cin": in_channel}


def fused_head_linear(feat, params, *, tm_max=256, tk_max=4096):
    """Fused fc_coord / fc_sigma forward.  feat: (B, Cin) -> (B, 4J) float32,
    lanes [0:2J) = normalized coord + bias, lanes [2J:4J) = sigmoid(sigma + bias)."""
    w = params["w"]
    b = params["b"]
    n_coord = params["n_coord"]
    n_out = params["n_out"]
    cin = params["cin"]
    kp, np_ = w.shape
    B, c_in = feat.shape
    assert c_in == cin, "feature width must match the head's in_channel"

    # Activations move to the weight dtype (bf16 by default): halves DMA bytes and
    # doubles MXU issue rate.  Accumulation + epilogue stay f32.
    x = feat.astype(w.dtype)

    tm = min(tm_max, _round_up(B, 8))
    bp = _round_up(B, tm)
    # Keep >=2 M blocks for training-sized batches so v7x's 2nd TensorCore gets work.
    if bp // tm == 1 and tm >= 16:
        tm_half = _round_up((tm + 1) // 2, 8)
        if tm_half < tm:
            tm = tm_half
            bp = _round_up(B, tm)

    single_k = kp <= tk_max
    if single_k:
        tk = kp
        num_k = 1
    else:
        num_k = -(-kp // tk_max)
        tk = _round_up(-(-kp // num_k), 128)
        kp_run = tk * num_k
        if kp_run != kp:       # rare very-large-Cin fallback: per-call weight re-pad
            w = jnp.pad(w, ((0, kp_run - kp), (0, 0)))
        kp = kp_run

    if (bp, kp) != (B, c_in):
        x = jnp.pad(x, ((0, bp - B), (0, kp - c_in)))   # zeros: exact for dot and norm

    cost = pl.CostEstimate(
        flops=2 * bp * kp * np_,
        transcendentals=bp * np_,                        # rsqrt + sigmoid epilogue
        bytes_accessed=(bp * kp * x.dtype.itemsize
                        + kp * np_ * w.dtype.itemsize
                        + np_ * 4 + bp * np_ * 4),
    )
    compiler_params_1d = pltpu.CompilerParams(
        dimension_semantics=("parallel",),
        vmem_limit_bytes=32 * 1024 * 1024,
    )
    compiler_params_2d = pltpu.CompilerParams(
        dimension_semantics=("parallel", "arbitrary"),
        vmem_limit_bytes=32 * 1024 * 1024,
    )

    if single_k:
        kernel = functools.partial(_fused_head_kernel, n_coord=n_coord, n_out=n_out)
        out = pl.pallas_call(
            kernel,
            out_shape=jax.ShapeDtypeStruct((bp, np_), jnp.float32),
            grid_spec=pltpu.PrefetchScalarGridSpec(
                num_scalar_prefetch=0,
                grid=(bp // tm,),
                in_specs=[
                    pl.BlockSpec((tm, kp), lambda i: (i, 0)),
                    pl.BlockSpec((kp, np_), lambda i: (0, 0)),
                    pl.BlockSpec((1, np_), lambda i: (0, 0)),
                ],
                out_specs=pl.BlockSpec((tm, np_), lambda i: (i, 0)),
            ),
            compiler_params=compiler_params_1d,
            cost_estimate=cost,
        )(x, w, b)
    else:
        kernel = functools.partial(_fused_head_kernel_ktiled,
                                   n_coord=n_coord, n_out=n_out)
        out = pl.pallas_call(
            kernel,
            out_shape=jax.ShapeDtypeStruct((bp, np_), jnp.float32),
            grid_spec=pltpu.PrefetchScalarGridSpec(
                num_scalar_prefetch=0,
                grid=(bp // tm, num_k),
                in_specs=[
                    pl.BlockSpec((tm, tk), lambda i, k: (i, k)),
                    pl.BlockSpec((tk, np_), lambda i, k: (k, 0)),
                    pl.BlockSpec((1, np_), lambda i, k: (0, 0)),
                ],
                out_specs=pl.BlockSpec((tm, np_), lambda i, k: (i, 0)),
                scratch_shapes=[
                    pltpu.VMEM((tm, np_), jnp.float32),   # f32 matmul accumulator
                    pltpu.VMEM((tm, 128), jnp.float32),   # lane-dense sum-of-squares
                ],
            ),
            compiler_params=compiler_params_2d,
            cost_estimate=cost,
        )(x, w, b)

    return out[:B, :n_out]


def regressflow_head(feat, params, num_joints):
    """pred_jts / sigma / scores, matching RegressFlow.forward's head epilogue."""
    B = feat.shape[0]
    out = fused_head_linear(feat, params)     # (B, 4J): [coord | sigmoid(sigma)]
    n_coord = params["n_coord"]
    n_out = params["n_out"]
    pred_jts = out[:, :n_coord].reshape(B, num_joints, 2)
    sigma = out[:, n_coord:n_out].reshape(B, num_joints, -1)
    # TODO(synk): the per-joint pair-mean for `scores` needs a strided cross-lane
    # gather in-kernel; it is a tiny (B, J, 2) reduce so it stays in plain JAX.
    scores = jnp.mean(1.0 - sigma, axis=2, keepdims=True)
    return pred_jts, sigma, scores


if __name__ == "__main__":
    key = jax.random.PRNGKey(0)
    k_feat, k_head = jax.random.split(key)

    # Small shapes consistent with the RegressFlow head:
    # pooled feature (B, C) -> fused Linear(C, 2 * num_joints * 2)
    B, C, NUM_JOINTS = 4, 256, 17

    feat = jax.random.normal(k_feat, (B, C), jnp.float32)
    params = init_head_params(k_head, C, NUM_JOINTS, dtype=jnp.bfloat16)

    pred_jts, sigma, scores = jax.block_until_ready(
        regressflow_head(feat, params, NUM_JOINTS))

    # Plain-JAX reference using the SAME (bf16) params and bf16-cast feature,
    # so its precision matches what the kernel consumes (f32 accumulation both).
    n_coord = params["n_coord"]
    n_out = params["n_out"]
    w_ref = params["w"][:C, :n_out].astype(jnp.float32)
    b_ref = params["b"][0, :n_out]
    x_ref = feat.astype(jnp.bfloat16).astype(jnp.float32)
    y = x_ref @ w_ref
    x_norm = jnp.linalg.norm(x_ref, axis=1, keepdims=True)
    ref_coord = (y[:, :n_coord] / x_norm + b_ref[:n_coord]).reshape(B, NUM_JOINTS, 2)
    ref_sigma = jax.nn.sigmoid(
        y[:, n_coord:n_out] + b_ref[n_coord:n_out]).reshape(B, NUM_JOINTS, -1)
    ref_scores = jnp.mean(1.0 - ref_sigma, axis=2, keepdims=True)

    assert jnp.allclose(pred_jts, ref_coord, atol=1e-3, rtol=1e-3), "coord mismatch"
    assert jnp.allclose(sigma, ref_sigma, atol=1e-3, rtol=1e-3), "sigma mismatch"
    assert jnp.allclose(scores, ref_scores, atol=1e-3, rtol=1e-3), "scores mismatch"

    print("KERNEL_OK")
</pallas_src>

<mosaic_0001>
module attributes {stable_mosaic.version = 11 : i64} {
  func.func @_fused_head_kernel(%arg0: i32, %arg1: memref<8x256xbf16, #tpu.memory_space<vmem>>, %arg2: memref<256x128xbf16, #tpu.memory_space<vmem>>, %arg3: memref<1x128xf32, #tpu.memory_space<vmem>>, %arg4: memref<8x128xf32, #tpu.memory_space<vmem>>) attributes {dimension_semantics = [#tpu.dimension_semantics<parallel>], iteration_bounds = array<i64: 1>, scalar_prefetch = 0 : i64, scratch_operands = 0 : i64, tpu.core_type = #tpu.core_type<tc>, window_params = [{transform_indices = @transform_0, window_bounds = array<i64: 8, 256>}, {pipeline_mode = #tpu.pipeline_mode<synchronous>, transform_indices = @transform_1, window_bounds = array<i64: 256, 128>}, {pipeline_mode = #tpu.pipeline_mode<synchronous>, transform_indices = @transform_2, window_bounds = array<i64: 1, 128>}, {transform_indices = @transform_3, window_bounds = array<i64: 8, 128>}]} {
    %c0 = arith.constant 0 : index
    %c0_0 = arith.constant 0 : index
    %0 = vector.load %arg1[%c0, %c0_0] : memref<8x256xbf16, #tpu.memory_space<vmem>>, vector<8x256xbf16>
    %c0_1 = arith.constant 0 : index
    %c0_2 = arith.constant 0 : index
    %1 = vector.load %arg2[%c0_1, %c0_2] : memref<256x128xbf16, #tpu.memory_space<vmem>>, vector<256x128xbf16>
    %cst = arith.constant dense<0.000000e+00> : vector<8x128xf32>
    %2 = tpu.matmul %0, %1, %cst {dimension_numbers = #tpu.dot_dimension_numbers<[1], [0], [0], [1], [0, 0, 1, 1], [], []>} : vector<8x256xbf16>, vector<256x128xbf16>, vector<8x128xf32> -> vector<8x128xf32>
    %3 = arith.extf %0 : vector<8x256xbf16> to vector<8x256xf32>
    %4 = arith.mulf %3, %3 : vector<8x256xf32>
    %cst_3 = arith.constant dense<0.000000e+00> : vector<8xf32>
    %5 = vector.multi_reduction <add>, %4, %cst_3 [1] : vector<8x256xf32> to vector<8xf32>
    %6 = vector.shape_cast %5 : vector<8xf32> to vector<8x1xf32>
    %cst_4 = arith.constant 1.000000e-30 : f32
    %7 = vector.broadcast %cst_4 : f32 to vector<8x1xf32>
    %8 = arith.maximumf %6, %7 : vector<8x1xf32>
    %9 = math.rsqrt %8 : vector<8x1xf32>
    %c0_5 = arith.constant 0 : index
    %c0_6 = arith.constant 0 : index
    %10 = vector.load %arg3[%c0_5, %c0_6] : memref<1x128xf32, #tpu.memory_space<vmem>>, vector<1x128xf32>
    %11 = tpu.iota {dimensions = array<i32: 1>} : vector<8x128xi32>
    %c34_i32 = arith.constant 34 : i32
    %12 = vector.broadcast %c34_i32 : i32 to vector<8x128xi32>
    %13 = arith.cmpi slt, %11, %12 : vector<8x128xi32>
    %c34_i32_7 = arith.constant 34 : i32
    %14 = vector.broadcast %c34_i32_7 : i32 to vector<8x128xi32>
    %15 = arith.cmpi sge, %11, %14 : vector<8x128xi32>
    %c68_i32 = arith.constant 68 : i32
    %16 = vector.broadcast %c68_i32 : i32 to vector<8x128xi32>
    %17 = arith.cmpi slt, %11, %16 : vector<8x128xi32>
    %18 = arith.andi %15, %17 : vector<8x128xi1>
    %19 = vector.broadcast %9 : vector<8x1xf32> to vector<8x128xf32>
    %20 = arith.mulf %2, %19 : vector<8x128xf32>
    %21 = arith.select %13, %20, %2 : vector<8x128xi1>, vector<8x128xf32>
    %22 = vector.broadcast %10 : vector<1x128xf32> to vector<8x128xf32>
    %23 = arith.addf %21, %22 : vector<8x128xf32>
    %cst_8 = arith.constant 0.000000e+00 : f32
    %24 = vector.broadcast %cst_8 : f32 to vector<8x128xf32>
    %25 = arith.subf %24, %23 : vector<8x128xf32>
    %26 = math.exp %25 : vector<8x128xf32>
    %cst_9 = arith.constant 1.000000e+00 : f32
    %27 = vector.broadcast %cst_9 : f32 to vector<8x128xf32>
    %28 = arith.addf %27, %26 : vector<8x128xf32>
    %cst_10 = arith.constant 1.000000e+00 : f32
    %29 = vector.broadcast %cst_10 : f32 to vector<8x128xf32>
    %30 = arith.divf %29, %28 : vector<8x128xf32>
    %31 = arith.select %18, %30, %23 : vector<8x128xi1>, vector<8x128xf32>
    %c0_11 = arith.constant 0 : index
    %c0_12 = arith.constant 0 : index
    %32 = vector.load %arg4[%c0_11, %c0_12] : memref<8x128xf32, #tpu.memory_space<vmem>>, vector<8x128xf32>
    tpu.vector_store %arg4[%c0_11, %c0_12], %31 {strides = array<i32>} : memref<8x128xf32, #tpu.memory_space<vmem>>, vector<8x128xf32>,
    return
  }
  func.func @transform_0(%arg0: i32) -> (i32, i32) {
    %c0_i32 = arith.constant 0 : i32
    %c0_i32_0 = arith.constant 0 : i32
    return %arg0, %c0_i32 : i32, i32
  }
  func.func @transform_1(%arg0: i32) -> (i32, i32) {
    %c0_i32 = arith.constant 0 : i32
    %c0_i32_0 = arith.constant 0 : i32
    %c0_i32_1 = arith.constant 0 : i32
    return %c0_i32, %c0_i32_0 : i32, i32
  }
  func.func @transform_2(%arg0: i32) -> (i32, i32) {
    %c0_i32 = arith.constant 0 : i32
    %c0_i32_0 = arith.constant 0 : i32
    %c0_i32_1 = arith.constant 0 : i32
    return %c0_i32, %c0_i32_0 : i32, i32
  }
  func.func @transform_3(%arg0: i32) -> (i32, i32) {
    %c0_i32 = arith.constant 0 : i32
    %c0_i32_0 = arith.constant 0 : i32
    return %arg0, %c0_i32 : i32, i32
  }
}

</mosaic_0001>

<llo_original>
// kernel: tpu_custom_call.1
$region0: #{tpu_custom_call.1}
  #allocation0 [shape = 'u32[]', space=smem, size = 0x4, offset = 0x4, fixed_abs, tag = 'smem constant byte address 0x4 - core index']
  #allocation1 [shape = 'u32[72,128]{1,0:T(1,128)}', space=vmem, size = 0x9000, scoped, tag = 'internal scratch']
  %s0 = inlined_call_operand.hbm [shape: bf16[8,256], index: 0, kind: input, shape index: {}]
  %s1 = inlined_call_operand.hbm [shape: bf16[256,128], index: 1, kind: input, shape index: {}]
  %s2 = inlined_call_operand.vmem [shape: f32[1,128], index: 2, kind: input, shape index: {}]
  %s3 = inlined_call_operand.hbm [shape: f32[8,128], index: 3, kind: output, shape index: {}]
  %s4 = sld [smem:[#allocation0]]
  $region30: #{tpu_custom_call.1} parent=0
    _
  %s6 = ssub.s32 1, %s4
  %s7 = scalar_select 0, %s6, %s4
  $region1: #{tpu_custom_call.1} parent=0
    #allocation2 [shape = 'u8[4096]{0}', space=vmem, size = 0x1000, scoped, tag = 'input window, operand 0, single buffered']
    #allocation3 [shape = 's32[1]{0}', space=sflag, size = 0x4, scoped, tag = 'scoped memory for tpu_custom_call.1']
    #allocation4 [shape = 's32[1]{0}', space=sflag, size = 0x4, scoped, tag = 'scoped memory for tpu_custom_call.1']
    #allocation5 [shape = 'u8[65536]{0}', space=vmem, size = 0x10000, scoped, tag = 'input window, operand 1, single buffered']
    #allocation6 [shape = 's32[1]{0}', space=sflag, size = 0x4, scoped, tag = 'scoped memory for tpu_custom_call.1']
    #allocation7 [shape = 'u8[4096]{0}', space=vmem, size = 0x1000, scoped, tag = 'output window, operand 0, single buffered']
    %8 = vsyncpa [#allocation3], 0
    %9 = vsyncpa [#allocation6], 0
    %10 = vsyncpa [#allocation4], 0
    // Predicated region
    $region2: #{tpu_custom_call.1} parent=1 // pred_check
      _
    $region3: #{tpu_custom_call.1} parent=1 // pred_check_branch
      %12 = sbr.rel (0) target = $region5
    $region4: #{tpu_custom_call.1} parent=1 // pred_region
      %14 = vsyncadd [#allocation3], 0
      %s16 = sshll.u32 %s0, 4
      %s17 = int_to_ptr.hbm [resolvable:$true] %s16
      %s18 = sshll.u32 [#allocation2], 4
      %s19 = int_to_ptr.vmem [resolvable:$true] %s18
      %21 = dma.hbm_to_vmem [thread:$0]  %s17, 128, %s19, [#allocation3]
    $region5: #{tpu_custom_call.1} parent=1 // pred_fallthru
      _
    // Predicated region
    $region6: #{tpu_custom_call.1} parent=1 // pred_check
      _
    $region7: #{tpu_custom_call.1} parent=1 // pred_check_branch
      %23 = sbr.rel (0) target = $region9
    $region8: #{tpu_custom_call.1} parent=1 // pred_region
      %25 = vsyncadd [#allocation6], 0
      %s26 = sshll.u32 %s1, 4
      %s27 = int_to_ptr.hbm [resolvable:$true] %s26
      %s28 = sshll.u32 [#allocation5], 4
      %s29 = int_to_ptr.vmem [resolvable:$true] %s28
      %34 = dma.hbm_to_vmem [thread:$0]  %s27, 2048, %s29, [#allocation6], 64, 64, 4
    $region9: #{tpu_custom_call.1} parent=1 // pred_fallthru
      _
    // Predicated region
    $region10: #{tpu_custom_call.1} parent=1 // pred_check
      _
    $region11: #{tpu_custom_call.1} parent=1 // pred_check_branch
      %36 = sbr.rel (0) target = $region13
    $region12: #{tpu_custom_call.1} parent=1 // pred_region
      _
    $region13: #{tpu_custom_call.1} parent=1 // pred_fallthru
      _
    // Predicated region
    $region14: #{tpu_custom_call.1} parent=1 // pred_check
      _
    $region15: #{tpu_custom_call.1} parent=1 // pred_check_branch
      %38 = sbr.rel (0) target = $region17
    $region16: #{tpu_custom_call.1} parent=1 // pred_region
      %40 = dma.done [#allocation3], 128
    $region17: #{tpu_custom_call.1} parent=1 // pred_fallthru
      _
    // Predicated region
    $region18: #{tpu_custom_call.1} parent=1 // pred_check
      _
    $region19: #{tpu_custom_call.1} parent=1 // pred_check_branch
      %42 = sbr.rel (0) target = $region21
    $region20: #{tpu_custom_call.1} parent=1 // pred_region
      %44 = dma.done [#allocation6], 2048
    $region21: #{tpu_custom_call.1} parent=1 // pred_fallthru
      _
    %v45 = vld [vmem:[#allocation2] sm:$0xff]
    %v46 = vld [vmem:[#allocation5] sm:$0xf]
    %v47 = vld [vmem:[#allocation5 + $0x4] sm:$0xf]
    %v48 = vld [vmem:[#allocation5 + $0x8] sm:$0xf]
    %v49 = vld [vmem:[#allocation5 + $0xc] sm:$0xf]
    %v50 = vld [vmem:[#allocation5 + $0x10] sm:$0xf]
    %v51 = vld [vmem:[#allocation5 + $0x14] sm:$0xf]
    %v52 = vld [vmem:[#allocation5 + $0x18] sm:$0xf]
    %v53 = vld [vmem:[#allocation5 + $0x1c] sm:$0xf]
    %v54 = vld [vmem:[#allocation5 + $0x20] sm:$0xf]
    %v55 = vld [vmem:[#allocation5 + $0x24] sm:$0xf]
    %v56 = vld [vmem:[#allocation5 + $0x28] sm:$0xf]
    %v57 = vld [vmem:[#allocation5 + $0x2c] sm:$0xf]
    %v58 = vld [vmem:[#allocation5 + $0x30] sm:$0xf]
    %v59 = vld [vmem:[#allocation5 + $0x34] sm:$0xf]
    %v60 = vld [vmem:[#allocation5 + $0x38] sm:$0xf]
    %v61 = vld [vmem:[#allocation5 + $0x3c] sm:$0xf]
    %v62 = vld [vmem:[#allocation5 + $0x40] sm:$0xf]
    %v63 = vld [vmem:[#allocation5 + $0x44] sm:$0xf]
    %v64 = vld [vmem:[#allocation5 + $0x48] sm:$0xf]
    %v65 = vld [vmem:[#allocation5 + $0x4c] sm:$0xf]
    %v66 = vld [vmem:[#allocation5 + $0x50] sm:$0xf]
    %v67 = vld [vmem:[#allocation5 + $0x54] sm:$0xf]
    %v68 = vld [vmem:[#allocation5 + $0x58] sm:$0xf]
    %v69 = vld [vmem:[#allocation5 + $0x5c] sm:$0xf]
    %v70 = vld [vmem:[#allocation5 + $0x60] sm:$0xf]
    %v71 = vld [vmem:[#allocation5 + $0x64] sm:$0xf]
    %v72 = vld [vmem:[#allocation5 + $0x68] sm:$0xf]
    %v73 = vld [vmem:[#allocation5 + $0x6c] sm:$0xf]
    %v74 = vld [vmem:[#allocation5 + $0x70] sm:$0xf]
    %v75 = vld [vmem:[#allocation5 + $0x74] sm:$0xf]
    %v76 = vld [vmem:[#allocation5 + $0x78] sm:$0xf]
    %v77 = vld [vmem:[#allocation5 + $0x7c] sm:$0xf]
    %v79 = vunpack.c.l.b16 %v45
    %v80 = vunpack.c.h.b16 %v45
    %v81 = vpack.c.b16 %v79, %v79
    %v82 = vpack.c.b16 %v80, %v80
    %v117 = vunpack.c.l.b16 %v46
    %v118 = vunpack.c.l.b16 %v47
    %v119 = vunpack.c.l.b16 %v48
    %v120 = vunpack.c.l.b16 %v49
    %v121 = vunpack.c.l.b16 %v50
    %v122 = vunpack.c.l.b16 %v51
    %v123 = vunpack.c.l.b16 %v52
    %v124 = vunpack.c.l.b16 %v53
    %v125 = vunpack.c.l.b16 %v54
    %v126 = vunpack.c.l.b16 %v55
    %v127 = vunpack.c.l.b16 %v56
    %v128 = vunpack.c.l.b16 %v57
    %v129 = vunpack.c.l.b16 %v58
    %v130 = vunpack.c.l.b16 %v59
    %v131 = vunpack.c.l.b16 %v60
    %v132 = vunpack.c.l.b16 %v61
    %v133 = vunpack.c.l.b16 %v62
    %v134 = vunpack.c.l.b16 %v63
    %v135 = vunpack.c.l.b16 %v64
    %v136 = vunpack.c.l.b16 %v65
    %v137 = vunpack.c.l.b16 %v66
    %v138 = vunpack.c.l.b16 %v67
    %v139 = vunpack.c.l.b16 %v68
    %v140 = vunpack.c.l.b16 %v69
    %v141 = vunpack.c.l.b16 %v70
    %v142 = vunpack.c.l.b16 %v71
    %v143 = vunpack.c.l.b16 %v72
    %v144 = vunpack.c.l.b16 %v73
    %v145 = vunpack.c.l.b16 %v74
    %v146 = vunpack.c.l.b16 %v75
    %v147 = vunpack.c.l.b16 %v76
    %v148 = vunpack.c.l.b16 %v77
    %v149 = vpack.c.b16 %v118, %v117
    %v150 = vpack.c.b16 %v120, %v119
    %v151 = vpack.c.b16 %v122, %v121
    %v152 = vpack.c.b16 %v124, %v123
    %v153 = vpack.c.b16 %v126, %v125
    %v154 = vpack.c.b16 %v128, %v127
    %v155 = vpack.c.b16 %v130, %v129
    %v156 = vpack.c.b16 %v132, %v131
    %v157 = vpack.c.b16 %v134, %v133
    %v158 = vpack.c.b16 %v136, %v135
    %v159 = vpack.c.b16 %v138, %v137
    %v160 = vpack.c.b16 %v140, %v139
    %v161 = vpack.c.b16 %v142, %v141
    %v162 = vpack.c.b16 %v144, %v143
    %v163 = vpack.c.b16 %v146, %v145
    %v164 = vpack.c.b16 %v148, %v147
    %181 = vmatpush.bf16.msra.mxu0 %v156
    %182 = vmatpush.bf16.msra.mxu0 %v155
    %183 = vmatpush.bf16.msra.mxu0 %v154
    %184 = vmatpush.bf16.msra.mxu0 %v153
    %185 = vmatpush.bf16.msra.mxu0 %v152
    %186 = vmatpush.bf16.msra.mxu0 %v151
    %187 = vmatpush.bf16.msra.mxu0 %v150
    %188 = vmatpush.bf16.msra.mxu0 %v149
    %189 = vmatmul.bf16.gmra.mxu0 %v81
    %v190 = vpop.f32.mrf.mxu0
    %v191 = vadd.f32 0.0, %v190
    %v192 = vpop.f32.mrf.mxu0
    %193 = vdwg.mxu0
    %194 = vmatpush.bf16.msra.mxu0 %v164
    %195 = vmatpush.bf16.msra.mxu0 %v163
    %196 = vmatpush.bf16.msra.mxu0 %v162
    %197 = vmatpush.bf16.msra.mxu0 %v161
    %198 = vmatpush.bf16.msra.mxu0 %v160
    %199 = vmatpush.bf16.msra.mxu0 %v159
    %200 = vmatpush.bf16.msra.mxu0 %v158
    %201 = vmatpush.bf16.msra.mxu0 %v157
    %202 = vmatmul.bf16.gmra.mxu0 %v82
    %v203 = vpop.f32.mrf.mxu0
    %v204 = vadd.f32 %v191, %v203
    %v205 = vpop.f32.mrf.mxu0
    %206 = vdwg.mxu0
    %v207 = vunpack.c.l.bf16 %v45
    %v208 = vunpack.c.h.bf16 %v45
    %v209 = vmul.f32 %v207, %v207
    %v210 = vmul.f32 %v208, %v208
    %v211 = vadd.f32 %v209, %v210
    %212 = vadd.xlane.f32.xlu0 %v211
    %v213 = vpop.xlane.xlu0 %212
    %v214 = vmax.f32 %v213, 1e-30
    %v215 = vrsqrt.pop %v214
    %v216 = vmul.f32 %v215, %v214
    %v217 = vmul.f32 %v216, %v215
    %v218 = vmul.f32 0.5, %v217
    %v219 = vsub.f32 1.5, %v218
    %v220 = vmul.f32 %v215, %v219
    %vm221 = vweird.f32 %v214
    %vm222 = vweird.f32 %v215
    %vm223 = vmor %vm221, %vm222
    %v224 = vsel %vm223, %v215, %v220
    %v225 = vld [vmem:[%s2] sm:$0x1]
    %v226 = vlaneseq
    %v227 = vand.u32 %v226, 127
    %vm228 = vcmp.lt.s32.totalorder %v227, 34
    %vm229 = vcmp.ge.s32.totalorder %v227, 34
    %vm230 = vcmp.lt.s32.totalorder %v227, 68
    %vm231 = vmand %vm229, %vm230
    %v232 = vmul.f32 %v204, %v224
    %v233 = vsel %vm228, %v232, %v204
    %v235 = vperm.slane %v225, 0
    %v237 = vadd.f32 %v233, %v235
    %v238 = vsub.f32 0.0, %v237
    %v239 = vmul.f32 %v238, 1.442695
    %v240 = vpow.pop %v239
    %v241 = vadd.f32 %v240, 1.0
    %v242 = vrcp.pop %v241
    %v243 = vmul.f32 %v241, %v242
    %v244 = vsub.f32 1.0, %v243
    %v245 = vmul.f32 %v242, %v244
    %v246 = vadd.f32 %v242, %v245
    %vm247 = vweird.f32 %v241
    %vm248 = vweird.f32 %v242
    %vm249 = vmor %vm247, %vm248
    %v250 = vsel %vm249, %v242, %v246
    %v251 = vand.u32 2147483647, %v241
    %vm252 = vcmp.eq.f32.partialorder %v251, 8.507059e+37
    %v253 = vand.u32 %v241, 2147483648
    %v254 = vor.u32 1.1754944e-38, %v253
    %v255 = vsel %vm252, %v254, %v250
    %v256 = vmul.f32 1.0, %v255
    %v257 = vsel %vm231, %v256, %v237
    %258 = vst [vmem:[#allocation7] sm:$0xff] %v257
    // Predicated region
    $region22: #{tpu_custom_call.1} parent=1 // pred_check
      _
    $region23: #{tpu_custom_call.1} parent=1 // pred_check_branch
      %260 = sbr.rel (0) target = $region25
    $region24: #{tpu_custom_call.1} parent=1 // pred_region
      %262 = vsyncadd [#allocation4], 0
      %s264 = sshll.u32 [#allocation7], 4
      %s265 = int_to_ptr.vmem [resolvable:$true] %s264
      %s266 = sshll.u32 %s3, 4
      %s267 = int_to_ptr.hbm [resolvable:$true] %s266
      %269 = dma.vmem_to_hbm [thread:$0]  %s265, 128, %s267, [#allocation4]
    $region25: #{tpu_custom_call.1} parent=1 // pred_fallthru
      _
    // Predicated region
    $region26: #{tpu_custom_call.1} parent=1 // pred_check
      _
    $region27: #{tpu_custom_call.1} parent=1 // pred_check_branch
      %271 = sbr.rel (0) target = $region29
    $region28: #{tpu_custom_call.1} parent=1 // pred_region
      %273 = dma.done [#allocation4], 128
    $region29: #{tpu_custom_call.1} parent=1 // pred_fallthru
      _
    %274 = vsyncpa [#allocation3], 1
    %275 = vsyncpa [#allocation6], 1
    %276 = vsyncpa [#allocation4], 1

</llo_original>
